<compile_context>
chip_gen: v7x
topology: tpu7x:2x2x1
jax: 0.10.0
libtpu: 0.0.40
codegen_flags: <defaults>
</compile_context>

<pallas_src>
import functools
import math

import jax
import jax.numpy as jnp
from jax.experimental import pallas as pl
from jax.experimental.pallas import tpu as pltpu


MIN_LOG_STD = -20.0
MAX_LOG_STD = 2.0
LOG_2PI = math.log(2.0 * math.pi)
LOG_2 = math.log(2.0)


def _sac_policy_kernel(
    state_ref,            # (Bt, S)
    eps_ref,              # (Bt, A)   standard-normal noise for rsample
    w1_ref, b1_ref,       # (S, H1), (1, H1)
    w2_ref, b2_ref,       # (H1, H2), (1, H2)
    w3_ref, b3_ref,       # (H2, 2A), (1, 2A)   fused mu / log_std heads
    out_ref,              # (Bt, A+1): cols [0, A) = action, col A = log_prob
    *,
    action_size,
):
    x = state_ref[...]

    # fc1 + relu, fc2 + relu
    h1 = jnp.maximum(
        jnp.dot(x, w1_ref[...], preferred_element_type=jnp.float32) + b1_ref[...], 0.0)
    h2 = jnp.maximum(
        jnp.dot(h1, w2_ref[...], preferred_element_type=jnp.float32) + b2_ref[...], 0.0)

    # fused heads: a single MXU push produces both mu and log_std
    y3 = jnp.dot(h2, w3_ref[...], preferred_element_type=jnp.float32) + b3_ref[...]
    mu = y3[:, :action_size]
    log_std = jnp.clip(y3[:, action_size:], MIN_LOG_STD, MAX_LOG_STD)
    std = jnp.exp(log_std)

    # reparameterized sample: u = mu + std * eps, eps ~ N(0, 1)
    # TODO(synk): eps could be generated in-kernel via pltpu.prng_seed +
    # pltpu.stateful_normal to drop the eps HBM read; kept as an explicit input
    # so the kernel stays bit-verifiable against the pure-JAX reference.
    eps = eps_ref[...]
    u = mu + std * eps
    action = jnp.tanh(u)

    # Normal(mu, std).log_prob(u) summed over actions; (u - mu)/std == eps exactly.
    normal_lp = -0.5 * eps * eps - log_std - 0.5 * LOG_2PI
    normal_lp_sum = jnp.sum(normal_lp, axis=1, keepdims=True)

    # tanh log-det-Jacobian (numerically stable softplus form; keep it this way).
    softplus_m2u = jnp.logaddexp(0.0, -2.0 * u)
    log_det_tanh = jnp.sum(2.0 * (LOG_2 - u - softplus_m2u), axis=1, keepdims=True)

    out_ref[:, :action_size] = action
    out_ref[:, action_size:] = normal_lp_sum - log_det_tanh


def _round_up(x, m):
    return ((x + m - 1) // m) * m


def sac_policy_forward(state, eps, params, *, b_tile=256):
    """SAC policy network (noise=True) as one Pallas call.

    state: (B, state_size) float32
    eps:   (B, action_size) float32 standard-normal noise
    params: dict of weights/biases (see init_params)
    returns: (action (B, A), log_prob (B, 1))
    """
    B, S = state.shape
    A = params["w3_mu"].shape[1]
    H1 = params["w1"].shape[1]
    H2 = params["w2"].shape[1]

    # Fuse the two head projections into one (H2, 2A) weight / (1, 2A) bias.
    w3 = jnp.concatenate([params["w3_mu"], params["w3_log_std"]], axis=1)
    b3 = jnp.concatenate([params["b3_mu"], params["b3_log_std"]], axis=1)

    # Batch tiling: tile is a multiple of 8 (sublanes); pad B up to tile multiple.
    bt = min(b_tile, _round_up(B, 8))
    b_pad = _round_up(B, bt)
    if b_pad != B:
        pad = b_pad - B
        state = jnp.pad(state, ((0, pad), (0, 0)))
        eps = jnp.pad(eps, ((0, pad), (0, 0)))

    grid = (b_pad // bt,)
    kernel = functools.partial(_sac_policy_kernel, action_size=A)

    out = pl.pallas_call(
        kernel,
        out_shape=jax.ShapeDtypeStruct((b_pad, A + 1), jnp.float32),
        grid=grid,
        in_specs=[
            pl.BlockSpec((bt, S), lambda i: (i, 0)),        # state: batch-tiled
            pl.BlockSpec((bt, A), lambda i: (i, 0)),        # eps:   batch-tiled
            pl.BlockSpec((S, H1), lambda i: (0, 0)),        # weights/biases stay
            pl.BlockSpec((1, H1), lambda i: (0, 0)),        # VMEM-resident across
            pl.BlockSpec((H1, H2), lambda i: (0, 0)),       # grid steps (constant
            pl.BlockSpec((1, H2), lambda i: (0, 0)),        # block index => no
            pl.BlockSpec((H2, 2 * A), lambda i: (0, 0)),    # re-DMA)
            pl.BlockSpec((1, 2 * A), lambda i: (0, 0)),
        ],
        out_specs=pl.BlockSpec((bt, A + 1), lambda i: (i, 0)),
        compiler_params=pltpu.CompilerParams(
            dimension_semantics=("parallel",)),
    )(state, eps,
      params["w1"], params["b1"],
      params["w2"], params["b2"],
      w3, b3)

    action = out[:B, :A]
    log_prob = out[:B, A:]
    return action, log_prob


def init_params(key, state_size, action_size, H1=64, H2=64):
    """Deterministic synthetic init (PyTorch-Linear-style uniform bounds)."""
    def linear(k, fan_in, fan_out):
        k_w, k_b = jax.random.split(k)
        bound = 1.0 / math.sqrt(fan_in)
        w = jax.random.uniform(k_w, (fan_in, fan_out), jnp.float32, -bound, bound)
        b = jax.random.uniform(k_b, (1, fan_out), jnp.float32, -bound, bound)
        return w, b

    k1, k2, k3, k4 = jax.random.split(key, 4)
    w1, b1 = linear(k1, state_size, H1)
    w2, b2 = linear(k2, H1, H2)
    w3m, b3m = linear(k3, H2, action_size)
    w3s, b3s = linear(k4, H2, action_size)
    return {
        "w1": w1, "b1": b1,
        "w2": w2, "b2": b2,
        "w3_mu": w3m, "b3_mu": b3m,
        "w3_log_std": w3s, "b3_log_std": b3s,
    }


def _reference_forward(state, eps, params):
    """Pure-JAX reference mirroring the PyTorch forward (noise=True)."""
    h1 = jnp.maximum(state @ params["w1"] + params["b1"], 0.0)
    h2 = jnp.maximum(h1 @ params["w2"] + params["b2"], 0.0)
    mu = h2 @ params["w3_mu"] + params["b3_mu"]
    log_std = jnp.clip(h2 @ params["w3_log_std"] + params["b3_log_std"],
                       MIN_LOG_STD, MAX_LOG_STD)
    std = jnp.exp(log_std)
    u = mu + std * eps
    action = jnp.tanh(u)
    z = (u - mu) / std
    normal_lp = jnp.sum(-0.5 * z * z - log_std - 0.5 * LOG_2PI, axis=1, keepdims=True)
    log_det = jnp.sum(2.0 * (LOG_2 - u - jnp.logaddexp(0.0, -2.0 * u)),
                      axis=1, keepdims=True)
    return action, normal_lp - log_det


if __name__ == "__main__":
    STATE_SIZE = 16
    ACTION_SIZE = 4
    H = 64

    key = jax.random.PRNGKey(0)
    k_params, k_state, k_eps, k_state2, k_eps2 = jax.random.split(key, 5)
    params = init_params(k_params, STATE_SIZE, ACTION_SIZE, H1=H, H2=H)

    # Case 1: small batch, single grid step.
    B1 = 8
    state1 = jax.random.normal(k_state, (B1, STATE_SIZE), jnp.float32)
    eps1 = jax.random.normal(k_eps, (B1, ACTION_SIZE), jnp.float32)
    action1, logp1 = sac_policy_forward(state1, eps1, params)
    action1 = jax.block_until_ready(action1)
    logp1 = jax.block_until_ready(logp1)
    ref_a1, ref_lp1 = _reference_forward(state1, eps1, params)
    assert action1.shape == (B1, ACTION_SIZE)
    assert logp1.shape == (B1, 1)
    assert jnp.allclose(action1, ref_a1, atol=1e-5, rtol=1e-5)
    assert jnp.allclose(logp1, ref_lp1, atol=1e-4, rtol=1e-4)

    # Case 2: multi-step batch grid (exercises resident weights + batch tiling).
    B2 = 24
    state2 = jax.random.normal(k_state2, (B2, STATE_SIZE), jnp.float32)
    eps2 = jax.random.normal(k_eps2, (B2, ACTION_SIZE), jnp.float32)
    action2, logp2 = sac_policy_forward(state2, eps2, params, b_tile=8)
    action2 = jax.block_until_ready(action2)
    logp2 = jax.block_until_ready(logp2)
    ref_a2, ref_lp2 = _reference_forward(state2, eps2, params)
    assert action2.shape == (B2, ACTION_SIZE)
    assert logp2.shape == (B2, 1)
    assert jnp.allclose(action2, ref_a2, atol=1e-5, rtol=1e-5)
    assert jnp.allclose(logp2, ref_lp2, atol=1e-4, rtol=1e-4)

    print("KERNEL_OK")
</pallas_src>

<mosaic_0001>
module attributes {stable_mosaic.version = 11 : i64} {
  func.func @_sac_policy_kernel(%arg0: i32, %arg1: memref<8x16xf32, #tpu.memory_space<vmem>>, %arg2: memref<8x4xf32, #tpu.memory_space<vmem>>, %arg3: memref<16x64xf32, #tpu.memory_space<vmem>>, %arg4: memref<1x64xf32, #tpu.memory_space<vmem>>, %arg5: memref<64x64xf32, #tpu.memory_space<vmem>>, %arg6: memref<1x64xf32, #tpu.memory_space<vmem>>, %arg7: memref<64x8xf32, #tpu.memory_space<vmem>>, %arg8: memref<1x8xf32, #tpu.memory_space<vmem>>, %arg9: memref<8x5xf32, #tpu.memory_space<vmem>>) attributes {dimension_semantics = [#tpu.dimension_semantics<parallel>], iteration_bounds = array<i64: 1>, scalar_prefetch = 0 : i64, scratch_operands = 0 : i64, tpu.core_type = #tpu.core_type<tc>, window_params = [{transform_indices = @transform_0, window_bounds = array<i64: 8, 16>}, {transform_indices = @transform_1, window_bounds = array<i64: 8, 4>}, {pipeline_mode = #tpu.pipeline_mode<synchronous>, transform_indices = @transform_2, window_bounds = array<i64: 16, 64>}, {pipeline_mode = #tpu.pipeline_mode<synchronous>, transform_indices = @transform_3, window_bounds = array<i64: 1, 64>}, {pipeline_mode = #tpu.pipeline_mode<synchronous>, transform_indices = @transform_4, window_bounds = array<i64: 64, 64>}, {pipeline_mode = #tpu.pipeline_mode<synchronous>, transform_indices = @transform_5, window_bounds = array<i64: 1, 64>}, {pipeline_mode = #tpu.pipeline_mode<synchronous>, transform_indices = @transform_6, window_bounds = array<i64: 64, 8>}, {pipeline_mode = #tpu.pipeline_mode<synchronous>, transform_indices = @transform_7, window_bounds = array<i64: 1, 8>}, {transform_indices = @transform_8, window_bounds = array<i64: 8, 5>}]} {
    %c0 = arith.constant 0 : index
    %c0_0 = arith.constant 0 : index
    %0 = vector.load %arg1[%c0, %c0_0] : memref<8x16xf32, #tpu.memory_space<vmem>>, vector<8x16xf32>
    %c0_1 = arith.constant 0 : index
    %c0_2 = arith.constant 0 : index
    %1 = vector.load %arg3[%c0_1, %c0_2] : memref<16x64xf32, #tpu.memory_space<vmem>>, vector<16x64xf32>
    %cst = arith.constant dense<0.000000e+00> : vector<8x64xf32>
    %2 = tpu.matmul %0, %1, %cst {dimension_numbers = #tpu.dot_dimension_numbers<[1], [0], [0], [1], [0, 0, 1, 1], [], []>} : vector<8x16xf32>, vector<16x64xf32>, vector<8x64xf32> -> vector<8x64xf32>
    %c0_3 = arith.constant 0 : index
    %c0_4 = arith.constant 0 : index
    %3 = vector.load %arg4[%c0_3, %c0_4] : memref<1x64xf32, #tpu.memory_space<vmem>>, vector<1x64xf32>
    %4 = vector.broadcast %3 : vector<1x64xf32> to vector<8x64xf32>
    %5 = arith.addf %2, %4 : vector<8x64xf32>
    %cst_5 = arith.constant 0.000000e+00 : f32
    %6 = vector.broadcast %cst_5 : f32 to vector<8x64xf32>
    %7 = arith.maximumf %5, %6 : vector<8x64xf32>
    %c0_6 = arith.constant 0 : index
    %c0_7 = arith.constant 0 : index
    %8 = vector.load %arg5[%c0_6, %c0_7] : memref<64x64xf32, #tpu.memory_space<vmem>>, vector<64x64xf32>
    %cst_8 = arith.constant dense<0.000000e+00> : vector<8x64xf32>
    %9 = tpu.matmul %7, %8, %cst_8 {dimension_numbers = #tpu.dot_dimension_numbers<[1], [0], [0], [1], [0, 0, 1, 1], [], []>} : vector<8x64xf32>, vector<64x64xf32>, vector<8x64xf32> -> vector<8x64xf32>
    %c0_9 = arith.constant 0 : index
    %c0_10 = arith.constant 0 : index
    %10 = vector.load %arg6[%c0_9, %c0_10] : memref<1x64xf32, #tpu.memory_space<vmem>>, vector<1x64xf32>
    %11 = vector.broadcast %10 : vector<1x64xf32> to vector<8x64xf32>
    %12 = arith.addf %9, %11 : vector<8x64xf32>
    %cst_11 = arith.constant 0.000000e+00 : f32
    %13 = vector.broadcast %cst_11 : f32 to vector<8x64xf32>
    %14 = arith.maximumf %12, %13 : vector<8x64xf32>
    %c0_12 = arith.constant 0 : index
    %c0_13 = arith.constant 0 : index
    %15 = vector.load %arg7[%c0_12, %c0_13] : memref<64x8xf32, #tpu.memory_space<vmem>>, vector<64x8xf32>
    %cst_14 = arith.constant dense<0.000000e+00> : vector<8x8xf32>
    %16 = tpu.matmul %14, %15, %cst_14 {dimension_numbers = #tpu.dot_dimension_numbers<[1], [0], [0], [1], [0, 0, 1, 1], [], []>} : vector<8x64xf32>, vector<64x8xf32>, vector<8x8xf32> -> vector<8x8xf32>
    %c0_15 = arith.constant 0 : index
    %c0_16 = arith.constant 0 : index
    %17 = vector.load %arg8[%c0_15, %c0_16] : memref<1x8xf32, #tpu.memory_space<vmem>>, vector<1x8xf32>
    %18 = vector.broadcast %17 : vector<1x8xf32> to vector<8x8xf32>
    %19 = arith.addf %16, %18 : vector<8x8xf32>
    %20 = vector.extract_strided_slice %19 {offsets = [0, 0], sizes = [8, 4], strides = [1, 1]} : vector<8x8xf32> to vector<8x4xf32>
    %21 = vector.extract_strided_slice %19 {offsets = [0, 4], sizes = [8, 4], strides = [1, 1]} : vector<8x8xf32> to vector<8x4xf32>
    %cst_17 = arith.constant -2.000000e+01 : f32
    %cst_18 = arith.constant 2.000000e+00 : f32
    %22 = vector.broadcast %cst_17 : f32 to vector<8x4xf32>
    %23 = arith.maximumf %22, %21 : vector<8x4xf32>
    %24 = vector.broadcast %cst_18 : f32 to vector<8x4xf32>
    %25 = arith.minimumf %24, %23 : vector<8x4xf32>
    %26 = math.exp %25 : vector<8x4xf32>
    %c0_19 = arith.constant 0 : index
    %c0_20 = arith.constant 0 : index
    %27 = vector.load %arg2[%c0_19, %c0_20] : memref<8x4xf32, #tpu.memory_space<vmem>>, vector<8x4xf32>
    %28 = arith.mulf %26, %27 : vector<8x4xf32>
    %29 = arith.addf %20, %28 : vector<8x4xf32>
    %30 = math.tanh %29 : vector<8x4xf32>
    %cst_21 = arith.constant -5.000000e-01 : f32
    %31 = vector.broadcast %cst_21 : f32 to vector<8x4xf32>
    %32 = arith.mulf %31, %27 : vector<8x4xf32>
    %33 = arith.mulf %32, %27 : vector<8x4xf32>
    %34 = arith.subf %33, %25 : vector<8x4xf32>
    %cst_22 = arith.constant 0.918938517 : f32
    %35 = vector.broadcast %cst_22 : f32 to vector<8x4xf32>
    %36 = arith.subf %34, %35 : vector<8x4xf32>
    %cst_23 = arith.constant dense<0.000000e+00> : vector<8xf32>
    %37 = vector.multi_reduction <add>, %36, %cst_23 [1] : vector<8x4xf32> to vector<8xf32>
    %38 = vector.shape_cast %37 : vector<8xf32> to vector<8x1xf32>
    %cst_24 = arith.constant -2.000000e+00 : f32
    %39 = vector.broadcast %cst_24 : f32 to vector<8x4xf32>
    %40 = arith.mulf %39, %29 : vector<8x4xf32>
    %cst_25 = arith.constant 0.000000e+00 : f32
    %41 = vector.broadcast %cst_25 : f32 to vector<8x4xf32>
    %42 = arith.maximumf %41, %40 : vector<8x4xf32>
    %43 = vector.broadcast %cst_25 : f32 to vector<8x4xf32>
    %44 = arith.subf %43, %40 : vector<8x4xf32>
    %45 = arith.cmpf one, %44, %44 : vector<8x4xf32>
    %46 = vector.broadcast %cst_25 : f32 to vector<8x4xf32>
    %47 = arith.addf %46, %40 : vector<8x4xf32>
    %48 = math.absf %44 : vector<8x4xf32>
    %cst_26 = arith.constant 0.000000e+00 : f32
    %49 = vector.broadcast %cst_26 : f32 to vector<8x4xf32>
    %50 = arith.subf %49, %48 : vector<8x4xf32>
    %51 = math.exp %50 : vector<8x4xf32>
    %52 = math.log1p %51 : vector<8x4xf32>
    %53 = arith.addf %42, %52 : vector<8x4xf32>
    %54 = arith.select %45, %47, %53 : vector<8x4xi1>, vector<8x4xf32>
    %cst_27 = arith.constant 0.693147182 : f32
    %55 = vector.broadcast %cst_27 : f32 to vector<8x4xf32>
    %56 = arith.subf %55, %29 : vector<8x4xf32>
    %57 = arith.subf %56, %54 : vector<8x4xf32>
    %cst_28 = arith.constant 2.000000e+00 : f32
    %58 = vector.broadcast %cst_28 : f32 to vector<8x4xf32>
    %59 = arith.mulf %58, %57 : vector<8x4xf32>
    %cst_29 = arith.constant dense<0.000000e+00> : vector<8xf32>
    %60 = vector.multi_reduction <add>, %59, %cst_29 [1] : vector<8x4xf32> to vector<8xf32>
    %61 = vector.shape_cast %60 : vector<8xf32> to vector<8x1xf32>
    %c0_30 = arith.constant 0 : index
    %c0_31 = arith.constant 0 : index
    %62 = vector.load %arg9[%c0_30, %c0_31] : memref<8x5xf32, #tpu.memory_space<vmem>>, vector<8x4xf32>
    tpu.vector_store %arg9[%c0_30, %c0_31], %30 {strides = array<i32>} : memref<8x5xf32, #tpu.memory_space<vmem>>, vector<8x4xf32>,
    %63 = arith.subf %38, %61 : vector<8x1xf32>
    %c0_32 = arith.constant 0 : index
    %c4 = arith.constant 4 : index
    %64 = vector.load %arg9[%c0_32, %c4] : memref<8x5xf32, #tpu.memory_space<vmem>>, vector<8x1xf32>
    tpu.vector_store %arg9[%c0_32, %c4], %63 {strides = array<i32>} : memref<8x5xf32, #tpu.memory_space<vmem>>, vector<8x1xf32>,
    return
  }
  func.func @transform_0(%arg0: i32) -> (i32, i32) {
    %c0_i32 = arith.constant 0 : i32
    %c0_i32_0 = arith.constant 0 : i32
    return %arg0, %c0_i32 : i32, i32
  }
  func.func @transform_1(%arg0: i32) -> (i32, i32) {
    %c0_i32 = arith.constant 0 : i32
    %c0_i32_0 = arith.constant 0 : i32
    return %arg0, %c0_i32 : i32, i32
  }
  func.func @transform_2(%arg0: i32) -> (i32, i32) {
    %c0_i32 = arith.constant 0 : i32
    %c0_i32_0 = arith.constant 0 : i32
    %c0_i32_1 = arith.constant 0 : i32
    return %c0_i32, %c0_i32_0 : i32, i32
  }
  func.func @transform_3(%arg0: i32) -> (i32, i32) {
    %c0_i32 = arith.constant 0 : i32
    %c0_i32_0 = arith.constant 0 : i32
    %c0_i32_1 = arith.constant 0 : i32
    return %c0_i32, %c0_i32_0 : i32, i32
  }
  func.func @transform_4(%arg0: i32) -> (i32, i32) {
    %c0_i32 = arith.constant 0 : i32
    %c0_i32_0 = arith.constant 0 : i32
    %c0_i32_1 = arith.constant 0 : i32
    return %c0_i32, %c0_i32_0 : i32, i32
  }
  func.func @transform_5(%arg0: i32) -> (i32, i32) {
    %c0_i32 = arith.constant 0 : i32
    %c0_i32_0 = arith.constant 0 : i32
    %c0_i32_1 = arith.constant 0 : i32
    return %c0_i32, %c0_i32_0 : i32, i32
  }
  func.func @transform_6(%arg0: i32) -> (i32, i32) {
    %c0_i32 = arith.constant 0 : i32
    %c0_i32_0 = arith.constant 0 : i32
    %c0_i32_1 = arith.constant 0 : i32
    return %c0_i32, %c0_i32_0 : i32, i32
  }
  func.func @transform_7(%arg0: i32) -> (i32, i32) {
    %c0_i32 = arith.constant 0 : i32
    %c0_i32_0 = arith.constant 0 : i32
    %c0_i32_1 = arith.constant 0 : i32
    return %c0_i32, %c0_i32_0 : i32, i32
  }
  func.func @transform_8(%arg0: i32) -> (i32, i32) {
    %c0_i32 = arith.constant 0 : i32
    %c0_i32_0 = arith.constant 0 : i32
    return %arg0, %c0_i32 : i32, i32
  }
}

</mosaic_0001>

<llo_original>
// kernel: tpu_custom_call.1
$region0: #{tpu_custom_call.1}
  #allocation0 [shape = 'u32[]', space=smem, size = 0x4, offset = 0x4, fixed_abs, tag = 'smem constant byte address 0x4 - core index']
  #allocation1 [shape = 'u32[144,128]{1,0:T(1,128)}', space=vmem, size = 0x12000, scoped, tag = 'internal scratch']
  %s0 = inlined_call_operand.vmem [shape: f32[8,16], index: 0, kind: input, shape index: {}]
  %s1 = inlined_call_operand.vmem [shape: f32[8,4], index: 1, kind: input, shape index: {}]
  %s2 = inlined_call_operand.vmem [shape: f32[16,64], index: 2, kind: input, shape index: {}]
  %s3 = inlined_call_operand.vmem [shape: f32[1,64], index: 3, kind: input, shape index: {}]
  %s4 = inlined_call_operand.vmem [shape: f32[64,64], index: 4, kind: input, shape index: {}]
  %s5 = inlined_call_operand.vmem [shape: f32[1,64], index: 5, kind: input, shape index: {}]
  %s6 = inlined_call_operand.vmem [shape: f32[64,8], index: 6, kind: input, shape index: {}]
  %s7 = inlined_call_operand.vmem [shape: f32[1,8], index: 7, kind: input, shape index: {}]
  %s8 = inlined_call_operand.hbm [shape: f32[8,5], index: 8, kind: output, shape index: {}]
  %s9 = sld [smem:[#allocation0]]
  $region42: #{tpu_custom_call.1} parent=0
    _
  %s11 = ssub.s32 1, %s9
  %s12 = scalar_select 0, %s11, %s9
  $region1: #{tpu_custom_call.1} parent=0
    #allocation2 [shape = 'u8[4096]{0}', space=vmem, size = 0x1000, scoped, tag = 'output window, operand 0, single buffered']
    #allocation3 [shape = 's32[1]{0}', space=sflag, size = 0x4, scoped, tag = 'scoped memory for tpu_custom_call.1']
    %13 = vsyncpa [#allocation3], 0
    // Predicated region
    $region2: #{tpu_custom_call.1} parent=1 // pred_check
      _
    $region3: #{tpu_custom_call.1} parent=1 // pred_check_branch
      %15 = sbr.rel (0) target = $region5
    $region4: #{tpu_custom_call.1} parent=1 // pred_region
      _
    $region5: #{tpu_custom_call.1} parent=1 // pred_fallthru
      _
    // Predicated region
    $region6: #{tpu_custom_call.1} parent=1 // pred_check
      _
    $region7: #{tpu_custom_call.1} parent=1 // pred_check_branch
      %17 = sbr.rel (0) target = $region9
    $region8: #{tpu_custom_call.1} parent=1 // pred_region
      _
    $region9: #{tpu_custom_call.1} parent=1 // pred_fallthru
      _
    // Predicated region
    $region10: #{tpu_custom_call.1} parent=1 // pred_check
      _
    $region11: #{tpu_custom_call.1} parent=1 // pred_check_branch
      %19 = sbr.rel (0) target = $region13
    $region12: #{tpu_custom_call.1} parent=1 // pred_region
      _
    $region13: #{tpu_custom_call.1} parent=1 // pred_fallthru
      _
    // Predicated region
    $region14: #{tpu_custom_call.1} parent=1 // pred_check
      _
    $region15: #{tpu_custom_call.1} parent=1 // pred_check_branch
      %21 = sbr.rel (0) target = $region17
    $region16: #{tpu_custom_call.1} parent=1 // pred_region
      _
    $region17: #{tpu_custom_call.1} parent=1 // pred_fallthru
      _
    // Predicated region
    $region18: #{tpu_custom_call.1} parent=1 // pred_check
      _
    $region19: #{tpu_custom_call.1} parent=1 // pred_check_branch
      %23 = sbr.rel (0) target = $region21
    $region20: #{tpu_custom_call.1} parent=1 // pred_region
      _
    $region21: #{tpu_custom_call.1} parent=1 // pred_fallthru
      _
    // Predicated region
    $region22: #{tpu_custom_call.1} parent=1 // pred_check
      _
    $region23: #{tpu_custom_call.1} parent=1 // pred_check_branch
      %25 = sbr.rel (0) target = $region25
    $region24: #{tpu_custom_call.1} parent=1 // pred_region
      _
    $region25: #{tpu_custom_call.1} parent=1 // pred_fallthru
      _
    // Predicated region
    $region26: #{tpu_custom_call.1} parent=1 // pred_check
      _
    $region27: #{tpu_custom_call.1} parent=1 // pred_check_branch
      %27 = sbr.rel (0) target = $region29
    $region28: #{tpu_custom_call.1} parent=1 // pred_region
      _
    $region29: #{tpu_custom_call.1} parent=1 // pred_fallthru
      _
    // Predicated region
    $region30: #{tpu_custom_call.1} parent=1 // pred_check
      _
    $region31: #{tpu_custom_call.1} parent=1 // pred_check_branch
      %29 = sbr.rel (0) target = $region33
    $region32: #{tpu_custom_call.1} parent=1 // pred_region
      _
    $region33: #{tpu_custom_call.1} parent=1 // pred_fallthru
      _
    %v30 = vld [vmem:[%s0] sm:$0xff]
    %v31 = vld [vmem:[%s2] sm:$0xff]
    %v32 = vld [vmem:[%s2 + $0x8] sm:$0xff]
    %v33 = vld [vmem:[%s3] sm:$0x1]
    %v35 = vlaneseq
    %v36 = vshrl.u32 %v35, 7
    %v37 = vsub.s32 0, %v36
    %v38 = vrot.slane %v33, %v37
    %vm40 = vcmask 130048
    %v42 = vsel %vm40, %v30, 0
    %44 = vmatprep.subr.mxu0 0.0
    %45 = vmatpush1.msra.mxu0 %v31
    %46 = vmatprep.subr.mxu0 0.0
    %47 = vmatpush1.msra.mxu0 %v32
    %48 = vmatprep.subr.mxu0 0.0
    %49 = vmatpush1.msra.mxu0 0.0
    %50 = vmatprep.subr.mxu0 0.0
    %51 = vmatpush1.msra.mxu0 0.0
    %52 = vmatprep.subr.mxu0 0.0
    %53 = vmatpush1.msra.mxu0 0.0
    %54 = vmatprep.subr.mxu0 0.0
    %55 = vmatpush1.msra.mxu0 0.0
    %56 = vmatprep.subr.mxu0 0.0
    %57 = vmatpush1.msra.mxu0 0.0
    %58 = vmatprep.subr.mxu0 0.0
    %59 = vmatpush1.msra.mxu0 0.0
    %60 = vmatprep.subr.mxu0 0.0
    %61 = vmatpush1.msra.mxu0 0.0
    %62 = vmatprep.subr.mxu0 0.0
    %63 = vmatpush1.msra.mxu0 0.0
    %64 = vmatprep.subr.mxu0 0.0
    %65 = vmatpush1.msra.mxu0 0.0
    %66 = vmatprep.subr.mxu0 0.0
    %67 = vmatpush1.msra.mxu0 0.0
    %68 = vmatprep.subr.mxu0 0.0
    %69 = vmatpush1.msra.mxu0 0.0
    %70 = vmatprep.subr.mxu0 0.0
    %71 = vmatpush1.msra.mxu0 0.0
    %72 = vmatprep.subr.mxu0 0.0
    %73 = vmatpush1.msra.mxu0 0.0
    %74 = vmatprep.subr.mxu0 0.0
    %75 = vmatpush1.msra.mxu0 0.0
    %76 = vmatprep.subr.mxu0 0.0
    %77 = vmatpush1.msra.mxu0 0.0
    %78 = vmatprep.subr.mxu0 0.0
    %79 = vmatpush1.msra.mxu0 0.0
    %80 = vmatprep.subr.mxu0 0.0
    %81 = vmatpush1.msra.mxu0 0.0
    %82 = vmatprep.subr.mxu0 0.0
    %83 = vmatpush1.msra.mxu0 0.0
    %84 = vmatprep.subr.mxu0 0.0
    %85 = vmatpush1.msra.mxu0 0.0
    %86 = vmatprep.subr.mxu0 0.0
    %87 = vmatpush1.msra.mxu0 0.0
    %88 = vmatprep.subr.mxu0 0.0
    %89 = vmatpush1.msra.mxu0 0.0
    %90 = vmatprep.subr.mxu0 0.0
    %91 = vmatpush1.msra.mxu0 0.0
    %92 = vmatprep.subr.mxu0 0.0
    %93 = vmatpush1.msra.mxu0 0.0
    %94 = vmatprep.subr.mxu0 0.0
    %95 = vmatpush1.msra.mxu0 0.0
    %96 = vmatprep.subr.mxu0 0.0
    %97 = vmatpush1.msra.mxu0 0.0
    %98 = vmatprep.subr.mxu0 0.0
    %99 = vmatpush1.msra.mxu0 0.0
    %100 = vmatprep.subr.mxu0 0.0
    %101 = vmatpush1.msra.mxu0 0.0
    %102 = vmatprep.subr.mxu0 0.0
    %103 = vmatpush1.msra.mxu0 0.0
    %104 = vmatprep.subr.mxu0 0.0
    %105 = vmatpush1.msra.mxu0 0.0
    %106 = vmatprep.subr.mxu0 0.0
    %107 = vmatpush1.msra.mxu0 0.0
    %108 = vmatprep.mubr.f32.mxu0 0.0
    %109 = vmatmul.mubr.f32.gmra.mrb[0].mxu0 %v42
    %v110 = vpop.f32.mrb[0].mxu0
    %v111 = vadd.f32 %v38, %v110
    %v112 = vpop.f32.mrb[0].mxu0
    %113 = vdwg.mxu0
    %v114 = vmax.f32 %v111, 0.0
    %v115 = vld [vmem:[%s4] sm:$0xff]
    %v116 = vld [vmem:[%s4 + $0x8] sm:$0xff]
    %v117 = vld [vmem:[%s4 + $0x10] sm:$0xff]
    %v118 = vld [vmem:[%s4 + $0x18] sm:$0xff]
    %v119 = vld [vmem:[%s4 + $0x20] sm:$0xff]
    %v120 = vld [vmem:[%s4 + $0x28] sm:$0xff]
    %v121 = vld [vmem:[%s4 + $0x30] sm:$0xff]
    %v122 = vld [vmem:[%s4 + $0x38] sm:$0xff]
    %v123 = vld [vmem:[%s5] sm:$0x1]
    %v125 = vlaneseq
    %v126 = vshrl.u32 %v125, 7
    %v127 = vsub.s32 0, %v126
    %v128 = vrot.slane %v123, %v127
    %vm130 = vcmask 523264
    %v132 = vsel %vm130, %v114, 0
    %134 = vmatprep.subr.mxu0 0.0
    %135 = vmatpush1.msra.mxu0 %v115
    %136 = vmatprep.subr.mxu0 0.0
    %137 = vmatpush1.msra.mxu0 %v116
    %138 = vmatprep.subr.mxu0 0.0
    %139 = vmatpush1.msra.mxu0 %v117
    %140 = vmatprep.subr.mxu0 0.0
    %141 = vmatpush1.msra.mxu0 %v118
    %142 = vmatprep.subr.mxu0 0.0
    %143 = vmatpush1.msra.mxu0 %v119
    %144 = vmatprep.subr.mxu0 0.0
    %145 = vmatpush1.msra.mxu0 %v120
    %146 = vmatprep.subr.mxu0 0.0
    %147 = vmatpush1.msra.mxu0 %v121
    %148 = vmatprep.subr.mxu0 0.0
    %149 = vmatpush1.msra.mxu0 %v122
    %150 = vmatprep.subr.mxu0 0.0
    %151 = vmatpush1.msra.mxu0 0.0
    %152 = vmatprep.subr.mxu0 0.0
    %153 = vmatpush1.msra.mxu0 0.0
    %154 = vmatprep.subr.mxu0 0.0
    %155 = vmatpush1.msra.mxu0 0.0
    %156 = vmatprep.subr.mxu0 0.0
    %157 = vmatpush1.msra.mxu0 0.0
    %158 = vmatprep.subr.mxu0 0.0
    %159 = vmatpush1.msra.mxu0 0.0
    %160 = vmatprep.subr.mxu0 0.0
    %161 = vmatpush1.msra.mxu0 0.0
    %162 = vmatprep.subr.mxu0 0.0
    %163 = vmatpush1.msra.mxu0 0.0
    %164 = vmatprep.subr.mxu0 0.0
    %165 = vmatpush1.msra.mxu0 0.0
    %166 = vmatprep.subr.mxu0 0.0
    %167 = vmatpush1.msra.mxu0 0.0
    %168 = vmatprep.subr.mxu0 0.0
    %169 = vmatpush1.msra.mxu0 0.0
    %170 = vmatprep.subr.mxu0 0.0
    %171 = vmatpush1.msra.mxu0 0.0
    %172 = vmatprep.subr.mxu0 0.0
    %173 = vmatpush1.msra.mxu0 0.0
    %174 = vmatprep.subr.mxu0 0.0
    %175 = vmatpush1.msra.mxu0 0.0
    %176 = vmatprep.subr.mxu0 0.0
    %177 = vmatpush1.msra.mxu0 0.0
    %178 = vmatprep.subr.mxu0 0.0
    %179 = vmatpush1.msra.mxu0 0.0
    %180 = vmatprep.subr.mxu0 0.0
    %181 = vmatpush1.msra.mxu0 0.0
    %182 = vmatprep.subr.mxu0 0.0
    %183 = vmatpush1.msra.mxu0 0.0
    %184 = vmatprep.subr.mxu0 0.0
    %185 = vmatpush1.msra.mxu0 0.0
    %186 = vmatprep.subr.mxu0 0.0
    %187 = vmatpush1.msra.mxu0 0.0
    %188 = vmatprep.subr.mxu0 0.0
    %189 = vmatpush1.msra.mxu0 0.0
    %190 = vmatprep.subr.mxu0 0.0
    %191 = vmatpush1.msra.mxu0 0.0
    %192 = vmatprep.subr.mxu0 0.0
    %193 = vmatpush1.msra.mxu0 0.0
    %194 = vmatprep.subr.mxu0 0.0
    %195 = vmatpush1.msra.mxu0 0.0
    %196 = vmatprep.subr.mxu0 0.0
    %197 = vmatpush1.msra.mxu0 0.0
    %198 = vmatprep.mubr.f32.mxu0 0.0
    %199 = vmatmul.mubr.f32.gmra.mrb[0].mxu0 %v132
    %v200 = vpop.f32.mrb[0].mxu0
    %v201 = vadd.f32 %v128, %v200
    %v202 = vpop.f32.mrb[0].mxu0
    %203 = vdwg.mxu0
    %v204 = vmax.f32 %v201, 0.0
    %v205 = vld [vmem:[%s6] sm:$0xff]
    %v206 = vld [vmem:[%s6 + $0x8] sm:$0xff]
    %v207 = vld [vmem:[%s6 + $0x10] sm:$0xff]
    %v208 = vld [vmem:[%s6 + $0x18] sm:$0xff]
    %v209 = vld [vmem:[%s6 + $0x20] sm:$0xff]
    %v210 = vld [vmem:[%s6 + $0x28] sm:$0xff]
    %v211 = vld [vmem:[%s6 + $0x30] sm:$0xff]
    %v212 = vld [vmem:[%s6 + $0x38] sm:$0xff]
    %v213 = vld [vmem:[%s7] sm:$0x1]
    %v215 = vlaneseq
    %v216 = vshrl.u32 %v215, 7
    %v217 = vsub.s32 0, %v216
    %v218 = vrot.slane %v213, %v217
    %v221 = vsel %vm130, %v204, 0
    %223 = vmatprep.subr.mxu0 0.0
    %224 = vmatpush1.msra.mxu0 %v205
    %225 = vmatprep.subr.mxu0 0.0
    %226 = vmatpush1.msra.mxu0 %v206
    %227 = vmatprep.subr.mxu0 0.0
    %228 = vmatpush1.msra.mxu0 %v207
    %229 = vmatprep.subr.mxu0 0.0
    %230 = vmatpush1.msra.mxu0 %v208
    %231 = vmatprep.subr.mxu0 0.0
    %232 = vmatpush1.msra.mxu0 %v209
    %233 = vmatprep.subr.mxu0 0.0
    %234 = vmatpush1.msra.mxu0 %v210
    %235 = vmatprep.subr.mxu0 0.0
    %236 = vmatpush1.msra.mxu0 %v211
    %237 = vmatprep.subr.mxu0 0.0
    %238 = vmatpush1.msra.mxu0 %v212
    %239 = vmatprep.subr.mxu0 0.0
    %240 = vmatpush1.msra.mxu0 0.0
    %241 = vmatprep.subr.mxu0 0.0
    %242 = vmatpush1.msra.mxu0 0.0
    %243 = vmatprep.subr.mxu0 0.0
    %244 = vmatpush1.msra.mxu0 0.0
    %245 = vmatprep.subr.mxu0 0.0
    %246 = vmatpush1.msra.mxu0 0.0
    %247 = vmatprep.subr.mxu0 0.0
    %248 = vmatpush1.msra.mxu0 0.0
    %249 = vmatprep.subr.mxu0 0.0
    %250 = vmatpush1.msra.mxu0 0.0
    %251 = vmatprep.subr.mxu0 0.0
    %252 = vmatpush1.msra.mxu0 0.0
    %253 = vmatprep.subr.mxu0 0.0
    %254 = vmatpush1.msra.mxu0 0.0
    %255 = vmatprep.subr.mxu0 0.0
    %256 = vmatpush1.msra.mxu0 0.0
    %257 = vmatprep.subr.mxu0 0.0
    %258 = vmatpush1.msra.mxu0 0.0
    %259 = vmatprep.subr.mxu0 0.0
    %260 = vmatpush1.msra.mxu0 0.0
    %261 = vmatprep.subr.mxu0 0.0
    %262 = vmatpush1.msra.mxu0 0.0
    %263 = vmatprep.subr.mxu0 0.0
    %264 = vmatpush1.msra.mxu0 0.0
    %265 = vmatprep.subr.mxu0 0.0
    %266 = vmatpush1.msra.mxu0 0.0
    %267 = vmatprep.subr.mxu0 0.0
    %268 = vmatpush1.msra.mxu0 0.0
    %269 = vmatprep.subr.mxu0 0.0
    %270 = vmatpush1.msra.mxu0 0.0
    %271 = vmatprep.subr.mxu0 0.0
    %272 = vmatpush1.msra.mxu0 0.0
    %273 = vmatprep.subr.mxu0 0.0
    %274 = vmatpush1.msra.mxu0 0.0
    %275 = vmatprep.subr.mxu0 0.0
    %276 = vmatpush1.msra.mxu0 0.0
    %277 = vmatprep.subr.mxu0 0.0
    %278 = vmatpush1.msra.mxu0 0.0
    %279 = vmatprep.subr.mxu0 0.0
    %280 = vmatpush1.msra.mxu0 0.0
    %281 = vmatprep.subr.mxu0 0.0
    %282 = vmatpush1.msra.mxu0 0.0
    %283 = vmatprep.subr.mxu0 0.0
    %284 = vmatpush1.msra.mxu0 0.0
    %285 = vmatprep.subr.mxu0 0.0
    %286 = vmatpush1.msra.mxu0 0.0
    %287 = vmatprep.mubr.f32.mxu0 0.0
    %288 = vmatmul.mubr.f32.gmra.mrb[0].mxu0 %v221
    %v289 = vpop.f32.mrb[0].mxu0
    %v290 = vadd.f32 %v218, %v289
    %v291 = vpop.f32.mrb[0].mxu0
    %292 = vdwg.mxu0
    %v293 = vmax.f32 %v290, -20.0
    %v294 = vmin.f32 %v293, 2.0
    %v295 = vmul.f32 %v294, 1.442695
    %v296 = vpow.pop %v295
    %v297 = vld [vmem:[%s1] sm:$0xff]
    %299 = vrot.lane.b32.xlu0 %v297, 4
    %v300 = vpop.permute.xlu0 %299
    %v302 = vmul.f32 %v296, %v300
    %304 = vrot.lane.b32.xlu0 %v302, 124
    %v305 = vpop.permute.xlu0 %304
    %v307 = vadd.f32 %v290, %v305
    %v308 = vtanh.pop %v307
    %v309 = vmul.f32 %v297, -0.5
    %v310 = vmul.f32 %v309, %v297
    %312 = vrot.lane.b32.xlu0 %v294, 124
    %v313 = vpop.permute.xlu0 %312
    %v315 = vsub.f32 %v310, %v313
    %v316 = vsub.f32 %v315, 0.9189385
    %vm317 = vcmask 31744
    %v318 = vsel %vm317, %v316, 0.0
    %319 = vadd.xlane.f32.xlu0 %v318
    %v320 = vpop.xlane.xlu0 %319
    %v321 = vmul.f32 %v307, -2.0
    %v322 = vmax.f32 %v321, 0.0
    %v323 = vsub.f32 0.0, %v321
    %vm324 = vcmp.ne.f32.partialorder %v323, %v323
    %v325 = vadd.f32 %v321, 0.0
    %v326 = vand.u32 2147483647, %v323
    %v327 = vsub.f32 0.0, %v326
    %v328 = vmul.f32 %v327, 1.442695
    %v329 = vpow.pop %v328
    %v330 = vadd.f32 %v329, 1.0
    %v331 = vlog2.pop %v330
    %v332 = vmul.f32 %v331, 0.6931472
    %v333 = vmul.f32 -0.5, %v329
    %v334 = vadd.f32 %v333, 1.0
    %v335 = vmul.f32 %v334, %v329
    %v336 = vand.u32 2147483647, %v329
    %vm337 = vcmp.lt.f32.partialorder %v336, 0.0004427343
    %v338 = vsel %vm337, %v335, %v332
    %v339 = vadd.f32 %v322, %v338
    %v340 = vsel %vm324, %v325, %v339
    %v341 = vsub.f32 0.6931472, %v307
    %v342 = vsub.f32 %v341, %v340
    %v343 = vmul.f32 %v342, 2.0
    %v344 = vsel %vm317, %v343, 0.0
    %345 = vadd.xlane.f32.xlu0 %v344
    %v346 = vpop.xlane.xlu0 %345
    %347 = vst.msk [vmem:[#allocation2] sm:$0xff] %vm317, %v308
    %v348 = vsub.f32 %v320, %v346
    %vm349 = vcmask 39968
    %350 = vst.msk [vmem:[#allocation2] sm:$0xff] %vm349, %v348
    // Predicated region
    $region34: #{tpu_custom_call.1} parent=1 // pred_check
      _
    $region35: #{tpu_custom_call.1} parent=1 // pred_check_branch
      %352 = sbr.rel (0) target = $region37
    $region36: #{tpu_custom_call.1} parent=1 // pred_region
      %s354 = ssub.s32 128, 128
      %355 = vsyncadd [#allocation3], %s354
      %s357 = sshll.u32 [#allocation2], 4
      %s358 = int_to_ptr.vmem [resolvable:$true] %s357
      %360 = dma.vmem_to_hbm [thread:$0]  %s358, 128, %s8, [#allocation3]
    $region37: #{tpu_custom_call.1} parent=1 // pred_fallthru
      _
    // Predicated region
    $region38: #{tpu_custom_call.1} parent=1 // pred_check
      _
    $region39: #{tpu_custom_call.1} parent=1 // pred_check_branch
      %362 = sbr.rel (0) target = $region41
    $region40: #{tpu_custom_call.1} parent=1 // pred_region
      %363 = dma.done [#allocation3], 128
    $region41: #{tpu_custom_call.1} parent=1 // pred_fallthru
      _
    %364 = vsyncpa [#allocation3], 1

</llo_original>
